<compile_context>
chip_gen: v5e
topology: v5e:2x2
jax: 0.10.0
libtpu: 0.0.40
codegen_flags: <defaults>
</compile_context>

<pallas_src>
import math

import jax
import jax.numpy as jnp
import numpy as np
from jax import lax
from jax.experimental import pallas as pl
from jax.experimental.pallas import tpu as pltpu

NUM_HEADS = 5
_LN_EPS = 1e-5
_PREC = jax.lax.Precision.HIGHEST  # full-f32 MXU passes in kernel AND reference

# --- torchaudio.functional.bandpass_biquad(fs=512, f0=10, Q=0.707) coefficients,
#     normalized by a0 (folded into the trace as python constants). b1 == 0.
_FS, _F0, _Q = 512.0, 10.0, 0.707
_W0 = 2.0 * math.pi * _F0 / _FS
_ALPHA = math.sin(_W0) / (2.0 * _Q)
_A0 = 1.0 + _ALPHA
_B0 = _ALPHA / _A0
_B2 = -_ALPHA / _A0
_A1 = (-2.0 * math.cos(_W0)) / _A0
_A2 = (1.0 - _ALPHA) / _A0


def gelu_tanh(x):
    # TODO(synk): PyTorch nn.GELU defaults to the exact erf form; the tanh
    # approximation is used because erf has no guaranteed Mosaic lowering.
    return 0.5 * x * (1.0 + jnp.tanh(0.7978845608028654 * (x + 0.044715 * x * x * x)))


def _layer_norm(v, g, b):
    mu = jnp.mean(v, axis=-1, keepdims=True)
    var = jnp.mean(jnp.square(v - mu), axis=-1, keepdims=True)
    return (v - mu) * lax.rsqrt(var + _LN_EPS) * g + b


# ----------------------------------------------------------------------------
# Kernel 1: l1 projection for the whole batch (one MXU matmul, B rows at once).
# pos_embed is pre-folded into the bias by the wrapper.
# ----------------------------------------------------------------------------
def latent_proj_kernel(z_ref, w_ref, b_ref, o_ref):
    """o = z @ W1 + (b1 + pos).   z:(B,L)  W1:(L,S*E)  b:(1,S*E)  o:(B,S*E)."""
    o_ref[...] = (jnp.dot(z_ref[...], w_ref[...],
                          preferred_element_type=jnp.float32, precision=_PREC)
                  + b_ref[...])


# ----------------------------------------------------------------------------
# Kernel 2: per-sample transformer encoder stack + 1x1 "deconv" + tanh.
# Grid over batch; per-depth weights are stacked with a leading depth dim and
# stay VMEM-resident for every grid step (constant index maps).
# ----------------------------------------------------------------------------
def encoder_conv_kernel(x_ref,
                        ln1_w_ref, ln1_b_ref,
                        wq_ref, bq_ref, wk_ref, bk_ref, wv_ref, bv_ref,
                        wo_ref, bo_ref, ln2_w_ref, ln2_b_ref,
                        wf1_ref, bf1_ref, wf2_ref, bf2_ref,
                        wc_ref, bc_ref, out_ref):
    """x_ref:(S,E) one sample (pos already added); out_ref:(S,C)."""
    x = x_ref[...]                                     # (S, E)
    S, E = x.shape
    depth = wq_ref.shape[0]
    dh = E // NUM_HEADS
    inv_scale = 1.0 / math.sqrt(float(E))              # TTS-GAN scales by sqrt(emb_size)

    for d in range(depth):                             # static unroll over depth
        # --- ResidualAdd( LayerNorm -> MultiHeadAttention -> Dropout(id) ) ---
        xn = _layer_norm(x, ln1_w_ref[d], ln1_b_ref[d])
        q = jnp.dot(xn, wq_ref[d], preferred_element_type=jnp.float32,
                    precision=_PREC) + bq_ref[d]
        k = jnp.dot(xn, wk_ref[d], preferred_element_type=jnp.float32,
                    precision=_PREC) + bk_ref[d]
        v = jnp.dot(xn, wv_ref[d], preferred_element_type=jnp.float32,
                    precision=_PREC) + bv_ref[d]
        wo_d = wo_ref[d]                               # (E, E), loaded once per block
        attn = jnp.zeros((S, E), jnp.float32)
        for h in range(NUM_HEADS):                     # static unroll over heads
            lo, hi = h * dh, (h + 1) * dh
            qh, kh, vh = q[:, lo:hi], k[:, lo:hi], v[:, lo:hi]
            energy = lax.dot_general(qh, kh, (((1,), (1,)), ((), ())),
                                     preferred_element_type=jnp.float32,
                                     precision=_PREC) * inv_scale        # (S, S)
            m = jnp.max(energy, axis=-1, keepdims=True)
            p = jnp.exp(energy - m)
            att = p / jnp.sum(p, axis=-1, keepdims=True)
            oh = jnp.dot(att, vh, preferred_element_type=jnp.float32,
                         precision=_PREC)                                # (S, dh)
            # Fold this head straight through its rows of the output projection:
            # avoids a lane-narrow concat of 5 (S,2) tiles on the critical path.
            attn = attn + jnp.dot(oh, wo_d[lo:hi, :],
                                  preferred_element_type=jnp.float32,
                                  precision=_PREC)
        x = x + attn + bo_ref[d]

        # --- ResidualAdd( LayerNorm -> FeedForward(GELU) -> Dropout(id) ) ---
        xn2 = _layer_norm(x, ln2_w_ref[d], ln2_b_ref[d])
        h1 = jnp.dot(xn2, wf1_ref[d], preferred_element_type=jnp.float32,
                     precision=_PREC) + bf1_ref[d]
        h1 = gelu_tanh(h1)
        x = x + jnp.dot(h1, wf2_ref[d], preferred_element_type=jnp.float32,
                        precision=_PREC) + bf2_ref[d]

    # deconv = Conv2d(E, C, kernel 1x1)  ==  per-token linear E -> C, then tanh.
    y = jnp.dot(x, wc_ref[...], preferred_element_type=jnp.float32,
                precision=_PREC) + bc_ref[...]
    out_ref[...] = jnp.tanh(y)


# ----------------------------------------------------------------------------
# Kernel 3: band-pass biquad IIR + clamp(-1,1) + sigmoid, time-major layout.
# ----------------------------------------------------------------------------
def biquad_sigmoid_kernel(x_ref, o_ref):
    """x_ref/o_ref: (S, N) with N = batch*channels across lanes.

    The recurrence is serial only in S; the feed-forward FIR term (b0*x[t] +
    b2*x[t-2], b1==0) has no feedback dependence, so it is consumed from the
    pre-loaded x tile with static indices; only the 2-tap feedback (2 mul +
    2 add per step) sits on the unrolled serial chain.  clamp+sigmoid are
    applied once, vectorized over the whole (S, N) tile, after the loop
    (torchaudio.lfilter feeds back UNclamped y; clamp applies to the output).
    """
    S, N = x_ref.shape
    x = x_ref[...]                                  # (S, N), one full-tile load
    u = _B0 * x                                     # vectorized FIR b0 term
    zero = jnp.zeros((1, N), jnp.float32)
    y1, y2 = zero, zero
    for t in range(S):                              # static unroll, static slices
        acc = u[t:t + 1, :]
        if t >= 2:
            acc = acc + _B2 * x[t - 2:t - 1, :]
        yt = acc - _A1 * y1 - _A2 * y2
        o_ref[pl.ds(t, 1), :] = yt                  # raw (unclamped) y for feedback
        y2, y1 = y1, yt
    o_ref[...] = jax.nn.sigmoid(jnp.clip(o_ref[...], -1.0, 1.0))


# ----------------------------------------------------------------------------
# Wrapper
# ----------------------------------------------------------------------------
def tts_generator_filtered(z, params):
    """z: (B, latent_dim) f32 -> (B, channels, 1, seq_len) f32."""
    B = z.shape[0]
    S, E = params["pos"].shape
    C = params["wc"].shape[1]

    # Stage 1: latent -> flat token embeddings, one batched matmul.
    # pos_embed folded into the l1 bias (l1(z).view(B,S,E) + pos is row-major).
    b_fold = params["b1"] + params["pos"].reshape(1, S * E)
    x_flat = pl.pallas_call(
        latent_proj_kernel,
        out_shape=jax.ShapeDtypeStruct((B, S * E), jnp.float32),
        in_specs=[pl.BlockSpec(memory_space=pltpu.MemorySpace.VMEM)] * 3,
        out_specs=pl.BlockSpec(memory_space=pltpu.MemorySpace.VMEM),
    )(z, params["w1"], b_fold)
    x0 = x_flat.reshape(B, S, E)                     # layout glue only (l1.view)

    # Stage 2: per-sample encoder + 1x1 conv + tanh, batch-parallel grid.
    pnames = ("ln1_w", "ln1_b", "wq", "bq", "wk", "bk", "wv", "bv",
              "wo", "bo", "ln2_w", "ln2_b", "wf1", "bf1", "wf2", "bf2", "wc", "bc")
    block_params = [params[k] for k in pnames]
    in_specs = [pl.BlockSpec((None, S, E), lambda b: (b, 0, 0))]
    for p in block_params:
        # Weights: full-array blocks with constant index maps -> fetched once,
        # resident in VMEM for every grid step.
        in_specs.append(pl.BlockSpec(p.shape, lambda b, nd=p.ndim: (0,) * nd))
    g = pl.pallas_call(
        encoder_conv_kernel,
        out_shape=jax.ShapeDtypeStruct((B, S, C), jnp.float32),
        grid=(B,),
        in_specs=in_specs,
        out_specs=pl.BlockSpec((None, S, C), lambda b: (b, 0, 0)),
        compiler_params=pltpu.CompilerParams(dimension_semantics=("parallel",)),
    )(x0, *block_params)

    # Stage 3: biquad band-pass + clamp + sigmoid, time-major (S, B*C).
    sig = jnp.transpose(g, (1, 0, 2)).reshape(S, B * C)
    filt = pl.pallas_call(
        biquad_sigmoid_kernel,
        out_shape=jax.ShapeDtypeStruct((S, B * C), jnp.float32),
        in_specs=[pl.BlockSpec(memory_space=pltpu.MemorySpace.VMEM)],
        out_specs=pl.BlockSpec(memory_space=pltpu.MemorySpace.VMEM),
    )(sig)
    out = jnp.transpose(filt.reshape(S, B, C), (1, 2, 0)).reshape(B, C, 1, S)
    return out


# ----------------------------------------------------------------------------
# Parameter init (PyTorch-style uniform +-1/sqrt(fan_in); weights stored as
# (in, out) so the kernels do x @ W; biases stored 2-D for clean broadcasting).
# ----------------------------------------------------------------------------
def init_params(key, *, latent_dim, seq_len, embed_dim, depth, ffn_dim, channels):
    L, S, E, D, F, C = latent_dim, seq_len, embed_dim, depth, ffn_dim, channels
    ks = iter(jax.random.split(key, 21))

    def lin(k, fan_in, shape):
        bound = 1.0 / math.sqrt(fan_in)
        return jax.random.uniform(k, shape, jnp.float32, -bound, bound)

    return dict(
        w1=lin(next(ks), L, (L, S * E)),
        b1=lin(next(ks), L, (1, S * E)),
        # nn.Parameter(zeros) in the module; randomized here to exercise the path.
        pos=0.02 * jax.random.normal(next(ks), (S, E), jnp.float32),
        ln1_w=1.0 + 0.1 * jax.random.normal(next(ks), (D, 1, E), jnp.float32),
        ln1_b=0.1 * jax.random.normal(next(ks), (D, 1, E), jnp.float32),
        wq=lin(next(ks), E, (D, E, E)), bq=lin(next(ks), E, (D, 1, E)),
        wk=lin(next(ks), E, (D, E, E)), bk=lin(next(ks), E, (D, 1, E)),
        wv=lin(next(ks), E, (D, E, E)), bv=lin(next(ks), E, (D, 1, E)),
        wo=lin(next(ks), E, (D, E, E)), bo=lin(next(ks), E, (D, 1, E)),
        ln2_w=1.0 + 0.1 * jax.random.normal(next(ks), (D, 1, E), jnp.float32),
        ln2_b=0.1 * jax.random.normal(next(ks), (D, 1, E), jnp.float32),
        wf1=lin(next(ks), E, (D, E, F)), bf1=lin(next(ks), E, (D, 1, F)),
        wf2=lin(next(ks), F, (D, F, E)), bf2=lin(next(ks), F, (D, 1, E)),
        wc=lin(next(ks), E, (E, C)), bc=lin(next(ks), E, (1, C)),
    )


# ----------------------------------------------------------------------------
# Pure-JAX (XLA) reference of the same forward, for verification.
# ----------------------------------------------------------------------------
def reference_forward(z, params):
    B = z.shape[0]
    S, E = params["pos"].shape
    C = params["wc"].shape[1]
    depth = params["wq"].shape[0]
    dh = E // NUM_HEADS
    inv_scale = 1.0 / math.sqrt(float(E))

    x = (jnp.dot(z, params["w1"], precision=_PREC) + params["b1"]).reshape(B, S, E)
    x = x + params["pos"]

    for d in range(depth):
        xn = _layer_norm(x, params["ln1_w"][d], params["ln1_b"][d])
        q = jnp.dot(xn, params["wq"][d], precision=_PREC) + params["bq"][d]
        k = jnp.dot(xn, params["wk"][d], precision=_PREC) + params["bk"][d]
        v = jnp.dot(xn, params["wv"][d], precision=_PREC) + params["bv"][d]
        qh = q.reshape(B, S, NUM_HEADS, dh).transpose(0, 2, 1, 3)
        kh = k.reshape(B, S, NUM_HEADS, dh).transpose(0, 2, 1, 3)
        vh = v.reshape(B, S, NUM_HEADS, dh).transpose(0, 2, 1, 3)
        energy = jnp.einsum("bhqd,bhkd->bhqk", qh, kh, precision=_PREC) * inv_scale
        att = jax.nn.softmax(energy, axis=-1)
        oh = jnp.einsum("bhqk,bhkd->bhqd", att, vh, precision=_PREC)
        o = oh.transpose(0, 2, 1, 3).reshape(B, S, E)
        x = x + jnp.dot(o, params["wo"][d], precision=_PREC) + params["bo"][d]

        xn2 = _layer_norm(x, params["ln2_w"][d], params["ln2_b"][d])
        h1 = gelu_tanh(jnp.dot(xn2, params["wf1"][d], precision=_PREC) + params["bf1"][d])
        x = x + jnp.dot(h1, params["wf2"][d], precision=_PREC) + params["bf2"][d]

    y = jnp.tanh(jnp.dot(x, params["wc"], precision=_PREC) + params["bc"])   # (B,S,C)

    sigs = jnp.transpose(y, (0, 2, 1)).reshape(B * C, S)

    def step(carry, xt):
        x1, x2, y1, y2 = carry
        yt = _B0 * xt + _B2 * x2 - _A1 * y1 - _A2 * y2
        return (xt, x1, yt, y1), yt

    z0 = jnp.zeros((B * C,), jnp.float32)
    _, ys = lax.scan(step, (z0, z0, z0, z0), sigs.T)                         # (S, B*C)
    out = jax.nn.sigmoid(jnp.clip(ys, -1.0, 1.0))
    return jnp.transpose(out).reshape(B, C, 1, S)


if __name__ == "__main__":
    B = 2
    LATENT, SEQ, EMBED, DEPTH, CH = 16, 16, 10, 3, 1
    FFN = 4 * EMBED

    key = jax.random.PRNGKey(0)
    kz, kp = jax.random.split(key)
    z = jax.random.normal(kz, (B, LATENT), jnp.float32)
    params = init_params(kp, latent_dim=LATENT, seq_len=SEQ, embed_dim=EMBED,
                         depth=DEPTH, ffn_dim=FFN, channels=CH)

    out = jax.block_until_ready(tts_generator_filtered(z, params))
    ref = jax.block_until_ready(reference_forward(z, params))

    assert out.shape == (B, CH, 1, SEQ)
    np.testing.assert_allclose(np.asarray(out), np.asarray(ref), rtol=1e-3, atol=1e-4)
    print("KERNEL_OK")
</pallas_src>

<mosaic_0001>
module attributes {stable_mosaic.version = 11 : i64} {
  func.func @latent_proj_kernel(%arg0: memref<2x16xf32, #tpu.memory_space<vmem>>, %arg1: memref<16x160xf32, #tpu.memory_space<vmem>>, %arg2: memref<1x160xf32, #tpu.memory_space<vmem>>, %arg3: memref<2x160xf32, #tpu.memory_space<vmem>>) attributes {dimension_semantics = [], scalar_prefetch = 0 : i64, scratch_operands = 0 : i64, tpu.core_type = #tpu.core_type<tc>} {
    %c0 = arith.constant 0 : index
    %c0_0 = arith.constant 0 : index
    %0 = vector.load %arg0[%c0, %c0_0] : memref<2x16xf32, #tpu.memory_space<vmem>>, vector<2x16xf32>
    %c0_1 = arith.constant 0 : index
    %c0_2 = arith.constant 0 : index
    %1 = vector.load %arg1[%c0_1, %c0_2] : memref<16x160xf32, #tpu.memory_space<vmem>>, vector<16x160xf32>
    %cst = arith.constant dense<0.000000e+00> : vector<2x160xf32>
    %2 = tpu.matmul %0, %1, %cst {dimension_numbers = #tpu.dot_dimension_numbers<[1], [0], [0], [1], [0, 0, 1, 1], [], []>, precision = #tpu.contract_precision<fp32>} : vector<2x16xf32>, vector<16x160xf32>, vector<2x160xf32> -> vector<2x160xf32>
    %c0_3 = arith.constant 0 : index
    %c0_4 = arith.constant 0 : index
    %3 = vector.load %arg2[%c0_3, %c0_4] : memref<1x160xf32, #tpu.memory_space<vmem>>, vector<1x160xf32>
    %4 = vector.broadcast %3 : vector<1x160xf32> to vector<2x160xf32>
    %5 = arith.addf %2, %4 : vector<2x160xf32>
    %c0_5 = arith.constant 0 : index
    %c0_6 = arith.constant 0 : index
    %6 = vector.load %arg3[%c0_5, %c0_6] : memref<2x160xf32, #tpu.memory_space<vmem>>, vector<2x160xf32>
    tpu.vector_store %arg3[%c0_5, %c0_6], %5 {strides = array<i32>} : memref<2x160xf32, #tpu.memory_space<vmem>>, vector<2x160xf32>,
    return
  }
}

</mosaic_0001>

<llo_original>
// kernel: tpu_custom_call.1
$region0: #{tpu_custom_call.1}
  #allocation0 [shape = 'u32[]', space=smem, size = 0x4, offset = 0x4, fixed_abs, tag = 'smem constant byte address 0x4 - core index']
  #allocation1 [shape = 'u32[72,128]{1,0:T(1,128)}', space=vmem, size = 0x9000, scoped, tag = 'internal scratch']
  %s0 = inlined_call_operand.hbm [shape: f32[2,16], index: 0, kind: input, shape index: {}]
  %s1 = inlined_call_operand.hbm [shape: f32[16,160], index: 1, kind: input, shape index: {}]
  %s2 = inlined_call_operand.hbm [shape: f32[1,160], index: 2, kind: input, shape index: {}]
  %s3 = inlined_call_operand.hbm [shape: f32[2,160], index: 3, kind: output, shape index: {}]
  %s4 = sld [smem:[#allocation0]]
  $region34: #{tpu_custom_call.1} parent=0
    _
  %s6 = ssub.s32 1, %s4
  %s7 = scalar_select 0, %s6, %s4
  $region1: #{tpu_custom_call.1} parent=0
    #allocation2 [shape = 'u8[1024]{0}', space=vmem, size = 0x400, scoped, tag = 'input window, operand 0, single buffered']
    #allocation3 [shape = 's32[1]{0}', space=sflag, size = 0x4, scoped, tag = 'scoped memory for tpu_custom_call.1']
    #allocation4 [shape = 's32[1]{0}', space=sflag, size = 0x4, scoped, tag = 'scoped memory for tpu_custom_call.1']
    #allocation5 [shape = 'u8[16384]{0}', space=vmem, size = 0x4000, scoped, tag = 'input window, operand 1, single buffered']
    #allocation6 [shape = 's32[1]{0}', space=sflag, size = 0x4, scoped, tag = 'scoped memory for tpu_custom_call.1']
    #allocation7 [shape = 'u8[1024]{0}', space=vmem, size = 0x400, scoped, tag = 'input window, operand 2, single buffered']
    #allocation8 [shape = 'u8[2048]{0}', space=vmem, size = 0x800, scoped, tag = 'output window, operand 0, single buffered']
    %8 = vsyncpa [#allocation3], 0
    %9 = vsyncpa [#allocation6], 0
    %10 = vsyncpa [#allocation4], 0
    // Predicated region
    $region2: #{tpu_custom_call.1} parent=1 // pred_check
      _
    $region3: #{tpu_custom_call.1} parent=1 // pred_check_branch
      %12 = sbr.rel (0) target = $region5
    $region4: #{tpu_custom_call.1} parent=1 // pred_region
      %14 = vsyncadd [#allocation3], 0
      %s16 = sshll.u32 %s0, 4
      %s17 = int_to_ptr.hbm [resolvable:$true] %s16
      %s18 = sshll.u32 [#allocation2], 4
      %s19 = int_to_ptr.vmem [resolvable:$true] %s18
      %21 = dma.hbm_to_vmem [thread:$0]  %s17, 32, %s19, [#allocation3]
    $region5: #{tpu_custom_call.1} parent=1 // pred_fallthru
      _
    // Predicated region
    $region6: #{tpu_custom_call.1} parent=1 // pred_check
      _
    $region7: #{tpu_custom_call.1} parent=1 // pred_check_branch
      %23 = sbr.rel (0) target = $region9
    $region8: #{tpu_custom_call.1} parent=1 // pred_region
      %25 = vsyncadd [#allocation6], 0
      %s26 = sshll.u32 %s1, 4
      %s27 = int_to_ptr.hbm [resolvable:$true] %s26
      %s28 = sshll.u32 [#allocation5], 4
      %s29 = int_to_ptr.vmem [resolvable:$true] %s28
      %34 = dma.hbm_to_vmem [thread:$0]  %s27, 512, %s29, [#allocation6], 256, 256, 16
    $region9: #{tpu_custom_call.1} parent=1 // pred_fallthru
      _
    // Predicated region
    $region10: #{tpu_custom_call.1} parent=1 // pred_check
      _
    $region11: #{tpu_custom_call.1} parent=1 // pred_check_branch
      %36 = sbr.rel (0) target = $region13
    $region12: #{tpu_custom_call.1} parent=1 // pred_region
      %38 = vsyncadd [#allocation6], 0
      %s40 = sshll.u32 %s2, 4
      %s41 = int_to_ptr.hbm [resolvable:$true] %s40
      %s42 = sshll.u32 [#allocation7], 4
      %s43 = int_to_ptr.vmem [resolvable:$true] %s42
      %45 = dma.hbm_to_vmem [thread:$0]  %s41, 32, %s43, [#allocation6]
    $region13: #{tpu_custom_call.1} parent=1 // pred_fallthru
      _
    // Predicated region
    $region14: #{tpu_custom_call.1} parent=1 // pred_check
      _
    $region15: #{tpu_custom_call.1} parent=1 // pred_check_branch
      %47 = sbr.rel (0) target = $region17
    $region16: #{tpu_custom_call.1} parent=1 // pred_region
      %49 = dma.done [#allocation3], 32
    $region17: #{tpu_custom_call.1} parent=1 // pred_fallthru
      _
    // Predicated region
    $region18: #{tpu_custom_call.1} parent=1 // pred_check
      _
    $region19: #{tpu_custom_call.1} parent=1 // pred_check_branch
      %51 = sbr.rel (0) target = $region21
    $region20: #{tpu_custom_call.1} parent=1 // pred_region
      %53 = dma.done [#allocation6], 512
    $region21: #{tpu_custom_call.1} parent=1 // pred_fallthru
      _
    // Predicated region
    $region22: #{tpu_custom_call.1} parent=1 // pred_check
      _
    $region23: #{tpu_custom_call.1} parent=1 // pred_check_branch
      %55 = sbr.rel (0) target = $region25
    $region24: #{tpu_custom_call.1} parent=1 // pred_region
      %57 = dma.done [#allocation6], 32
    $region25: #{tpu_custom_call.1} parent=1 // pred_fallthru
      _
    %v58 = vld [vmem:[#allocation2] sm:$0x3]
    %v59 = vld [vmem:[#allocation5] sm:$0xff]
    %v60 = vld [vmem:[#allocation5 + $0x8] sm:$0xff]
    %v61 = vld [vmem:[#allocation5 + $0x10] sm:$0xff]
    %v62 = vld [vmem:[#allocation5 + $0x18] sm:$0xff]
    %v63 = vld [vmem:[#allocation7] sm:$0x3]
    %v65 = vperm.slane %v63, 0
    %v66 = vperm.slane %v63, 1
    %vm69 = vcmask 130048
    %v71 = vsel %vm69, %v58, 0
    %73 = vmatpush.msra.mxu0 0.0
    %74 = vmatpush.msra.mxu0 0.0
    %75 = vmatpush.msra.mxu0 0.0
    %76 = vmatpush.msra.mxu0 0.0
    %77 = vmatpush.msra.mxu0 0.0
    %78 = vmatpush.msra.mxu0 0.0
    %79 = vmatpush.msra.mxu0 0.0
    %80 = vmatpush.msra.mxu0 0.0
    %81 = vmatpush.msra.mxu0 0.0
    %82 = vmatpush.msra.mxu0 0.0
    %83 = vmatpush.msra.mxu0 0.0
    %84 = vmatpush.msra.mxu0 0.0
    %85 = vmatpush.msra.mxu0 0.0
    %86 = vmatpush.msra.mxu0 0.0
    %v87 = vand.u32 %v61, 4294901760
    %88 = vmatpush.msra.mxu0 %v87
    %v89 = vand.u32 %v59, 4294901760
    %90 = vmatpush.msra.mxu0 %v89
    %v91 = vand.u32 %v71, 4294901760
    %v92 = vsub.f32 %v71, %v91
    %v93 = vand.u32 %v92, 4294901760
    %v94 = vsub.f32 %v92, %v93
    %v95 = vand.u32 %v94, 4294901760
    %96 = vmatmul.f32.gmra.mxu0 %v95
    %v97 = vpop.f32.mrf.mxu0
    %v98 = vadd.f32 %v65, %v97
    %99 = vdwg.mxu0
    %100 = vmatpush.msra.mxu0 0.0
    %101 = vmatpush.msra.mxu0 0.0
    %102 = vmatpush.msra.mxu0 0.0
    %103 = vmatpush.msra.mxu0 0.0
    %104 = vmatpush.msra.mxu0 0.0
    %105 = vmatpush.msra.mxu0 0.0
    %106 = vmatpush.msra.mxu0 0.0
    %107 = vmatpush.msra.mxu0 0.0
    %108 = vmatpush.msra.mxu0 0.0
    %109 = vmatpush.msra.mxu0 0.0
    %110 = vmatpush.msra.mxu0 0.0
    %111 = vmatpush.msra.mxu0 0.0
    %112 = vmatpush.msra.mxu0 0.0
    %113 = vmatpush.msra.mxu0 0.0
    %v114 = vand.u32 %v61, 4294901760
    %v115 = vsub.f32 %v61, %v114
    %v116 = vand.u32 %v115, 4294901760
    %v117 = vsub.f32 %v115, %v116
    %v118 = vand.u32 %v117, 4294901760
    %119 = vmatpush.msra.mxu0 %v118
    %v120 = vand.u32 %v59, 4294901760
    %v121 = vsub.f32 %v59, %v120
    %v122 = vand.u32 %v121, 4294901760
    %v123 = vsub.f32 %v121, %v122
    %v124 = vand.u32 %v123, 4294901760
    %125 = vmatpush.msra.mxu0 %v124
    %v126 = vand.u32 %v71, 4294901760
    %127 = vmatmul.f32.gmra.mxu0 %v126
    %v128 = vpop.f32.mrf.mxu0
    %v129 = vadd.f32 %v98, %v128
    %130 = vdwg.mxu0
    %131 = vmatpush.msra.mxu0 0.0
    %132 = vmatpush.msra.mxu0 0.0
    %133 = vmatpush.msra.mxu0 0.0
    %134 = vmatpush.msra.mxu0 0.0
    %135 = vmatpush.msra.mxu0 0.0
    %136 = vmatpush.msra.mxu0 0.0
    %137 = vmatpush.msra.mxu0 0.0
    %138 = vmatpush.msra.mxu0 0.0
    %139 = vmatpush.msra.mxu0 0.0
    %140 = vmatpush.msra.mxu0 0.0
    %141 = vmatpush.msra.mxu0 0.0
    %142 = vmatpush.msra.mxu0 0.0
    %143 = vmatpush.msra.mxu0 0.0
    %144 = vmatpush.msra.mxu0 0.0
    %v145 = vand.u32 %v61, 4294901760
    %v146 = vsub.f32 %v61, %v145
    %147 = vmatpush.msra.mxu0 %v146
    %v148 = vand.u32 %v59, 4294901760
    %v149 = vsub.f32 %v59, %v148
    %150 = vmatpush.msra.mxu0 %v149
    %v151 = vand.u32 %v71, 4294901760
    %v152 = vsub.f32 %v71, %v151
    %153 = vmatmul.f32.gmra.mxu0 %v152
    %v154 = vpop.f32.mrf.mxu0
    %v155 = vadd.f32 %v129, %v154
    %156 = vdwg.mxu0
    %157 = vmatpush.msra.mxu0 0.0
    %158 = vmatpush.msra.mxu0 0.0
    %159 = vmatpush.msra.mxu0 0.0
    %160 = vmatpush.msra.mxu0 0.0
    %161 = vmatpush.msra.mxu0 0.0
    %162 = vmatpush.msra.mxu0 0.0
    %163 = vmatpush.msra.mxu0 0.0
    %164 = vmatpush.msra.mxu0 0.0
    %165 = vmatpush.msra.mxu0 0.0
    %166 = vmatpush.msra.mxu0 0.0
    %167 = vmatpush.msra.mxu0 0.0
    %168 = vmatpush.msra.mxu0 0.0
    %169 = vmatpush.msra.mxu0 0.0
    %170 = vmatpush.msra.mxu0 0.0
    %v171 = vand.u32 %v61, 4294901760
    %172 = vmatpush.msra.mxu0 %v171
    %v173 = vand.u32 %v59, 4294901760
    %174 = vmatpush.msra.mxu0 %v173
    %v175 = vand.u32 %v71, 4294901760
    %v176 = vsub.f32 %v71, %v175
    %v177 = vand.u32 %v176, 4294901760
    %178 = vmatmul.f32.gmra.mxu0 %v177
    %v179 = vpop.f32.mrf.mxu0
    %v180 = vadd.f32 %v155, %v179
    %181 = vdwg.mxu0
    %182 = vmatpush.msra.mxu0 0.0
    %183 = vmatpush.msra.mxu0 0.0
    %184 = vmatpush.msra.mxu0 0.0
    %185 = vmatpush.msra.mxu0 0.0
    %186 = vmatpush.msra.mxu0 0.0
    %187 = vmatpush.msra.mxu0 0.0
    %188 = vmatpush.msra.mxu0 0.0
    %189 = vmatpush.msra.mxu0 0.0
    %190 = vmatpush.msra.mxu0 0.0
    %191 = vmatpush.msra.mxu0 0.0
    %192 = vmatpush.msra.mxu0 0.0
    %193 = vmatpush.msra.mxu0 0.0
    %194 = vmatpush.msra.mxu0 0.0
    %195 = vmatpush.msra.mxu0 0.0
    %v196 = vand.u32 %v61, 4294901760
    %v197 = vsub.f32 %v61, %v196
    %v198 = vand.u32 %v197, 4294901760
    %199 = vmatpush.msra.mxu0 %v198
    %v200 = vand.u32 %v59, 4294901760
    %v201 = vsub.f32 %v59, %v200
    %v202 = vand.u32 %v201, 4294901760
    %203 = vmatpush.msra.mxu0 %v202
    %v204 = vand.u32 %v71, 4294901760
    %205 = vmatmul.f32.gmra.mxu0 %v204
    %v206 = vpop.f32.mrf.mxu0
    %v207 = vadd.f32 %v180, %v206
    %208 = vdwg.mxu0
    %209 = vmatpush.msra.mxu0 0.0
    %210 = vmatpush.msra.mxu0 0.0
    %211 = vmatpush.msra.mxu0 0.0
    %212 = vmatpush.msra.mxu0 0.0
    %213 = vmatpush.msra.mxu0 0.0
    %214 = vmatpush.msra.mxu0 0.0
    %215 = vmatpush.msra.mxu0 0.0
    %216 = vmatpush.msra.mxu0 0.0
    %217 = vmatpush.msra.mxu0 0.0
    %218 = vmatpush.msra.mxu0 0.0
    %219 = vmatpush.msra.mxu0 0.0
    %220 = vmatpush.msra.mxu0 0.0
    %221 = vmatpush.msra.mxu0 0.0
    %222 = vmatpush.msra.mxu0 0.0
    %v223 = vand.u32 %v61, 4294901760
    %224 = vmatpush.msra.mxu0 %v223
    %v225 = vand.u32 %v59, 4294901760
    %226 = vmatpush.msra.mxu0 %v225
    %v227 = vand.u32 %v71, 4294901760
    %228 = vmatmul.f32.gmra.mxu0 %v227
    %v229 = vpop.f32.mrf.mxu0
    %v230 = vadd.f32 %v207, %v229
    %231 = vdwg.mxu0
    %232 = vmatpush.msra.mxu0 0.0
    %233 = vmatpush.msra.mxu0 0.0
    %234 = vmatpush.msra.mxu0 0.0
    %235 = vmatpush.msra.mxu0 0.0
    %236 = vmatpush.msra.mxu0 0.0
    %237 = vmatpush.msra.mxu0 0.0
    %238 = vmatpush.msra.mxu0 0.0
    %239 = vmatpush.msra.mxu0 0.0
    %240 = vmatpush.msra.mxu0 0.0
    %241 = vmatpush.msra.mxu0 0.0
    %242 = vmatpush.msra.mxu0 0.0
    %243 = vmatpush.msra.mxu0 0.0
    %244 = vmatpush.msra.mxu0 0.0
    %245 = vmatpush.msra.mxu0 0.0
    %v246 = vand.u32 %v62, 4294901760
    %247 = vmatpush.msra.mxu0 %v246
    %v248 = vand.u32 %v60, 4294901760
    %249 = vmatpush.msra.mxu0 %v248
    %v250 = vand.u32 %v71, 4294901760
    %v251 = vsub.f32 %v71, %v250
    %v252 = vand.u32 %v251, 4294901760
    %v253 = vsub.f32 %v251, %v252
    %v254 = vand.u32 %v253, 4294901760
    %255 = vmatmul.f32.gmra.mxu0 %v254
    %v256 = vpop.f32.mrf.mxu0
    %v257 = vadd.f32 %v66, %v256
    %258 = vdwg.mxu0
    %259 = vmatpush.msra.mxu0 0.0
    %260 = vmatpush.msra.mxu0 0.0
    %261 = vmatpush.msra.mxu0 0.0
    %262 = vmatpush.msra.mxu0 0.0
    %263 = vmatpush.msra.mxu0 0.0
    %264 = vmatpush.msra.mxu0 0.0
    %265 = vmatpush.msra.mxu0 0.0
    %266 = vmatpush.msra.mxu0 0.0
    %267 = vmatpush.msra.mxu0 0.0
    %268 = vmatpush.msra.mxu0 0.0
    %269 = vmatpush.msra.mxu0 0.0
    %270 = vmatpush.msra.mxu0 0.0
    %271 = vmatpush.msra.mxu0 0.0
    %272 = vmatpush.msra.mxu0 0.0
    %v273 = vand.u32 %v62, 4294901760
    %v274 = vsub.f32 %v62, %v273
    %v275 = vand.u32 %v274, 4294901760
    %v276 = vsub.f32 %v274, %v275
    %v277 = vand.u32 %v276, 4294901760
    %278 = vmatpush.msra.mxu0 %v277
    %v279 = vand.u32 %v60, 4294901760
    %v280 = vsub.f32 %v60, %v279
    %v281 = vand.u32 %v280, 4294901760
    %v282 = vsub.f32 %v280, %v281
    %v283 = vand.u32 %v282, 4294901760
    %284 = vmatpush.msra.mxu0 %v283
    %v285 = vand.u32 %v71, 4294901760
    %286 = vmatmul.f32.gmra.mxu0 %v285
    %v287 = vpop.f32.mrf.mxu0
    %v288 = vadd.f32 %v257, %v287
    %289 = vdwg.mxu0
    %290 = vmatpush.msra.mxu0 0.0
    %291 = vmatpush.msra.mxu0 0.0
    %292 = vmatpush.msra.mxu0 0.0
    %293 = vmatpush.msra.mxu0 0.0
    %294 = vmatpush.msra.mxu0 0.0
    %295 = vmatpush.msra.mxu0 0.0
    %296 = vmatpush.msra.mxu0 0.0
    %297 = vmatpush.msra.mxu0 0.0
    %298 = vmatpush.msra.mxu0 0.0
    %299 = vmatpush.msra.mxu0 0.0
    %300 = vmatpush.msra.mxu0 0.0
    %301 = vmatpush.msra.mxu0 0.0
    %302 = vmatpush.msra.mxu0 0.0
    %303 = vmatpush.msra.mxu0 0.0
    %v304 = vand.u32 %v62, 4294901760
    %v305 = vsub.f32 %v62, %v304
    %306 = vmatpush.msra.mxu0 %v305
    %v307 = vand.u32 %v60, 4294901760
    %v308 = vsub.f32 %v60, %v307
    %309 = vmatpush.msra.mxu0 %v308
    %v310 = vand.u32 %v71, 4294901760
    %v311 = vsub.f32 %v71, %v310
    %312 = vmatmul.f32.gmra.mxu0 %v311
    %v313 = vpop.f32.mrf.mxu0
    %v314 = vadd.f32 %v288, %v313
    %315 = vdwg.mxu0
    %316 = vmatpush.msra.mxu0 0.0
    %317 = vmatpush.msra.mxu0 0.0
    %318 = vmatpush.msra.mxu0 0.0
    %319 = vmatpush.msra.mxu0 0.0
    %320 = vmatpush.msra.mxu0 0.0
    %321 = vmatpush.msra.mxu0 0.0
    %322 = vmatpush.msra.mxu0 0.0
    %323 = vmatpush.msra.mxu0 0.0
    %324 = vmatpush.msra.mxu0 0.0
    %325 = vmatpush.msra.mxu0 0.0
    %326 = vmatpush.msra.mxu0 0.0
    %327 = vmatpush.msra.mxu0 0.0
    %328 = vmatpush.msra.mxu0 0.0
    %329 = vmatpush.msra.mxu0 0.0
    %v330 = vand.u32 %v62, 4294901760
    %331 = vmatpush.msra.mxu0 %v330
    %v332 = vand.u32 %v60, 4294901760
    %333 = vmatpush.msra.mxu0 %v332
    %v334 = vand.u32 %v71, 4294901760
    %v335 = vsub.f32 %v71, %v334
    %v336 = vand.u32 %v335, 4294901760
    %337 = vmatmul.f32.gmra.mxu0 %v336
    %v338 = vpop.f32.mrf.mxu0
    %v339 = vadd.f32 %v314, %v338
    %340 = vdwg.mxu0
    %341 = vmatpush.msra.mxu0 0.0
    %342 = vmatpush.msra.mxu0 0.0
    %343 = vmatpush.msra.mxu0 0.0
    %344 = vmatpush.msra.mxu0 0.0
    %345 = vmatpush.msra.mxu0 0.0
    %346 = vmatpush.msra.mxu0 0.0
    %347 = vmatpush.msra.mxu0 0.0
    %348 = vmatpush.msra.mxu0 0.0
    %349 = vmatpush.msra.mxu0 0.0
    %350 = vmatpush.msra.mxu0 0.0
    %351 = vmatpush.msra.mxu0 0.0
    %352 = vmatpush.msra.mxu0 0.0
    %353 = vmatpush.msra.mxu0 0.0
    %354 = vmatpush.msra.mxu0 0.0
    %v355 = vand.u32 %v62, 4294901760
    %v356 = vsub.f32 %v62, %v355
    %v357 = vand.u32 %v356, 4294901760
    %358 = vmatpush.msra.mxu0 %v357
    %v359 = vand.u32 %v60, 4294901760
    %v360 = vsub.f32 %v60, %v359
    %v361 = vand.u32 %v360, 4294901760
    %362 = vmatpush.msra.mxu0 %v361
    %v363 = vand.u32 %v71, 4294901760
    %364 = vmatmul.f32.gmra.mxu0 %v363
    %v365 = vpop.f32.mrf.mxu0
    %v366 = vadd.f32 %v339, %v365
    %367 = vdwg.mxu0
    %368 = vmatpush.msra.mxu0 0.0
    %369 = vmatpush.msra.mxu0 0.0
    %370 = vmatpush.msra.mxu0 0.0
    %371 = vmatpush.msra.mxu0 0.0
    %372 = vmatpush.msra.mxu0 0.0
    %373 = vmatpush.msra.mxu0 0.0
    %374 = vmatpush.msra.mxu0 0.0
    %375 = vmatpush.msra.mxu0 0.0
    %376 = vmatpush.msra.mxu0 0.0
    %377 = vmatpush.msra.mxu0 0.0
    %378 = vmatpush.msra.mxu0 0.0
    %379 = vmatpush.msra.mxu0 0.0
    %380 = vmatpush.msra.mxu0 0.0
    %381 = vmatpush.msra.mxu0 0.0
    %v382 = vand.u32 %v62, 4294901760
    %383 = vmatpush.msra.mxu0 %v382
    %v384 = vand.u32 %v60, 4294901760
    %385 = vmatpush.msra.mxu0 %v384
    %v386 = vand.u32 %v71, 4294901760
    %387 = vmatmul.f32.gmra.mxu0 %v386
    %v388 = vpop.f32.mrf.mxu0
    %v389 = vadd.f32 %v366, %v388
    %390 = vdwg.mxu0
    %v393 = vrot.slane %v389, 6
    %vm394 = vcmask 1041408
    %v395 = vsel %vm394, %v230, %v393
    %vm397 = vcmask 257026
    %vm398 = vmor %vm397, %vm394
    %399 = vst.msk [vmem:[#allocation8] sm:$0xf] %vm398, %v395
    // Predicated region
    $region26: #{tpu_custom_call.1} parent=1 // pred_check
      _
    $region27: #{tpu_custom_call.1} parent=1 // pred_check_branch
      %401 = sbr.rel (0) target = $region29
    $region28: #{tpu_custom_call.1} parent=1 // pred_region
      %403 = vsyncadd [#allocation4], 0
      %s405 = sshll.u32 [#allocation8], 4
      %s406 = int_to_ptr.vmem [resolvable:$true] %s405
      %s407 = sshll.u32 %s3, 4
      %s408 = int_to_ptr.hbm [resolvable:$true] %s407
      %410 = dma.vmem_to_hbm [thread:$0]  %s406, 64, %s408, [#allocation4]
    $region29: #{tpu_custom_call.1} parent=1 // pred_fallthru
      _
    // Predicated region
    $region30: #{tpu_custom_call.1} parent=1 // pred_check
      _
    $region31: #{tpu_custom_call.1} parent=1 // pred_check_branch
      %412 = sbr.rel (0) target = $region33
    $region32: #{tpu_custom_call.1} parent=1 // pred_region
      %414 = dma.done [#allocation4], 64
    $region33: #{tpu_custom_call.1} parent=1 // pred_fallthru
      _
    %415 = vsyncpa [#allocation3], 1
    %416 = vsyncpa [#allocation6], 1
    %417 = vsyncpa [#allocation4], 1

</llo_original>
